<compile_context>
chip_gen: v7x
topology: tpu7x:2x2x1
jax: 0.10.0
libtpu: 0.0.40
codegen_flags: <defaults>
</compile_context>

<pallas_src>
import functools

import jax
import jax.numpy as jnp
from jax.experimental import pallas as pl
from jax.experimental.pallas import tpu as pltpu


_LANES = 128
_SUBLANES = 8
_MIN_KERNEL_ELEMS = 16384   # below this, XLA softmax beats kernel-launch cost
_MIN_WIDE_TC = 512          # lane width at/above which tiles reach HBM roofline
_SPLIT_MIN_CPAD = 1024      # split a single full-width tile in two above this


def _round_up(n, m):
    return ((n + m - 1) // m) * m


@functools.lru_cache(maxsize=None)
def _vmem_config():
    """(vmem_limit_bytes, tile_budget_bytes) — generation aware.

    v5e/v6e have 128 MiB VMEM per TensorCore, v7x has 64 MiB; size the
    per-grid-step block budget (double-buffered in/out blocks + f32 temps)
    accordingly and set an explicit scoped-VMEM limit so the 16/32 MiB
    defaults never cap the tile size.
    """
    cap = 64 << 20                              # conservative default (v7x)
    try:
        cap = int(pltpu.get_tpu_info().vmem_capacity_bytes)
    except Exception:                           # older jax / interpret mode
        pass
    if cap >= (128 << 20):                      # v5e / v6e
        return 96 << 20, 56 << 20
    return 48 << 20, 24 << 20                   # v7x


# ---------------------------------------------------------------------------
# Kernels
# ---------------------------------------------------------------------------
def _softmax_dim0_kernel(x_ref, o_ref):
    """Numerically-stable softmax along axis 0 of an (R, TC) VMEM tile."""
    x = x_ref[...]
    if x.dtype != jnp.float32:
        x = x.astype(jnp.float32)
    x_max = jnp.max(x, axis=0, keepdims=True)          # XLU cross-sublane reduce
    if o_ref.dtype == jnp.float32:
        # Write exp(x - max) straight into the output block and rescale in
        # place: saves one R x TC f32 VMEM temporary (matters on v7x's 64 MiB).
        o_ref[...] = jnp.exp(x - x_max)                # EUP transcendental
        denom = jnp.sum(o_ref[...], axis=0, keepdims=True)
        o_ref[...] = o_ref[...] * pl.reciprocal(denom, approx=False)
    else:
        e = jnp.exp(x - x_max)
        denom = jnp.sum(e, axis=0, keepdims=True)
        o_ref[...] = (e * pl.reciprocal(denom, approx=False)).astype(o_ref.dtype)


def _softmax_dim0_stats_kernel(x_ref, m_ref, s_ref, m_sc, s_sc, *,
                               total_rows, block_rows, mask_rows):
    """Two-pass path, pass 1: online column-wise max / exp-sum over R blocks."""
    r = pl.program_id(1)

    @pl.when(r == 0)
    def _init():
        m_sc[...] = jnp.full_like(m_sc, -jnp.inf)
        s_sc[...] = jnp.zeros_like(s_sc)

    x = x_ref[...]
    if x.dtype != jnp.float32:
        x = x.astype(jnp.float32)
    if mask_rows:
        # The last R-block may read past the end of the array; neutralize the
        # garbage rows so the per-column max / sum stay correct.
        row = jax.lax.broadcasted_iota(jnp.int32, x.shape, 0) + r * block_rows
        x = jnp.where(row < total_rows, x, -jnp.inf)

    m_prev = m_sc[...]
    m_new = jnp.maximum(m_prev, jnp.max(x, axis=0, keepdims=True))
    s_sc[...] = s_sc[...] * jnp.exp(m_prev - m_new) + jnp.sum(
        jnp.exp(x - m_new), axis=0, keepdims=True)
    m_sc[...] = m_new

    @pl.when(r == pl.num_programs(1) - 1)
    def _finalize():
        m_ref[...] = m_sc[...]
        s_ref[...] = s_sc[...]


def _softmax_dim0_apply_kernel(x_ref, m_ref, s_ref, o_ref):
    """Two-pass path, pass 2: out = exp(x - max) / sum."""
    x = x_ref[...]
    if x.dtype != jnp.float32:
        x = x.astype(jnp.float32)
    e = jnp.exp(x - m_ref[...])
    o_ref[...] = (e * pl.reciprocal(s_ref[...], approx=False)).astype(o_ref.dtype)


# ---------------------------------------------------------------------------
# Tile planning
# ---------------------------------------------------------------------------
def _plan_single_pass(rows, cols, elem_bytes, temp_bytes, tile_budget):
    """Pick the column-tile width for the single-pass (R whole per block) path.

    Returns None when R is so tall that wide tiles don't fit — use two-pass.
    """
    c_pad = _round_up(cols, _LANES)
    # per lane-column: double-buffered in + out blocks plus f32 temporaries.
    per_lane = rows * (4 * elem_bytes + temp_bytes)
    tc = (tile_budget // per_lane) // _LANES * _LANES
    if tc < min(_MIN_WIDE_TC, c_pad):
        return None
    tc = min(tc, c_pad)
    if tc >= c_pad and c_pad >= _SPLIT_MIN_CPAD:
        # Keep >= 2 column tiles so the "parallel" grid axis actually shards
        # across v7x's two TensorCores (each half stays >= 512 lanes wide).
        tc = _round_up(-(-c_pad // 2), _LANES)
    return tc


def _plan_two_pass(rows, cols, elem_bytes, temp_bytes, tile_budget):
    """Pick (TR, TC) for the two-pass path: lane-wide tiles, blocked R."""
    c_pad = _round_up(cols, _LANES)
    tc = min(_MIN_WIDE_TC, c_pad)
    per_row = tc * (4 * elem_bytes + temp_bytes)
    tr = (tile_budget // per_row) // _SUBLANES * _SUBLANES
    tr = max(_SUBLANES, min(tr, _round_up(rows, _SUBLANES)))
    return tr, tc


# ---------------------------------------------------------------------------
# pallas_call wrappers
# ---------------------------------------------------------------------------
def _softmax_dim0_single_pass(x2d, out_dtype, tc, vmem_limit):
    rows, cols = x2d.shape
    return pl.pallas_call(
        _softmax_dim0_kernel,
        out_shape=jax.ShapeDtypeStruct((rows, cols), out_dtype),
        grid_spec=pltpu.PrefetchScalarGridSpec(
            num_scalar_prefetch=0,
            grid=(pl.cdiv(cols, tc),),
            in_specs=[pl.BlockSpec((rows, tc), lambda j: (0, j))],
            out_specs=pl.BlockSpec((rows, tc), lambda j: (0, j)),
        ),
        compiler_params=pltpu.CompilerParams(
            dimension_semantics=("parallel",),
            vmem_limit_bytes=vmem_limit,
        ),
    )(x2d)


def _softmax_dim0_two_pass(x2d, out_dtype, tr, tc, vmem_limit):
    rows, cols = x2d.shape
    col_grid = pl.cdiv(cols, tc)
    row_grid = pl.cdiv(rows, tr)

    stats_kernel = functools.partial(
        _softmax_dim0_stats_kernel,
        total_rows=rows, block_rows=tr, mask_rows=(rows % tr) != 0)

    m, s = pl.pallas_call(
        stats_kernel,
        out_shape=(jax.ShapeDtypeStruct((1, cols), jnp.float32),
                   jax.ShapeDtypeStruct((1, cols), jnp.float32)),
        grid_spec=pltpu.PrefetchScalarGridSpec(
            num_scalar_prefetch=0,
            grid=(col_grid, row_grid),
            in_specs=[pl.BlockSpec((tr, tc), lambda j, r: (r, j))],
            out_specs=[pl.BlockSpec((1, tc), lambda j, r: (0, j)),
                       pl.BlockSpec((1, tc), lambda j, r: (0, j))],
            scratch_shapes=[pltpu.VMEM((1, tc), jnp.float32),
                            pltpu.VMEM((1, tc), jnp.float32)],
        ),
        compiler_params=pltpu.CompilerParams(
            dimension_semantics=("parallel", "arbitrary"),
            vmem_limit_bytes=vmem_limit,
        ),
    )(x2d)

    return pl.pallas_call(
        _softmax_dim0_apply_kernel,
        out_shape=jax.ShapeDtypeStruct((rows, cols), out_dtype),
        grid_spec=pltpu.PrefetchScalarGridSpec(
            num_scalar_prefetch=0,
            grid=(col_grid, row_grid),
            in_specs=[pl.BlockSpec((tr, tc), lambda j, r: (r, j)),
                      pl.BlockSpec((1, tc), lambda j, r: (0, j)),
                      pl.BlockSpec((1, tc), lambda j, r: (0, j))],
            out_specs=pl.BlockSpec((tr, tc), lambda j, r: (r, j)),
        ),
        compiler_params=pltpu.CompilerParams(
            dimension_semantics=("parallel", "parallel"),
            vmem_limit_bytes=vmem_limit,
        ),
    )(x2d, m, s)


# ---------------------------------------------------------------------------
# Public entry point (PyTorch nn.Softmax(dim=0) / SoftmaxStable semantics)
# ---------------------------------------------------------------------------
def my_softmax(x):
    """Numerically-stable softmax over dim=0."""
    if x.ndim == 1 or x.size < _MIN_KERNEL_ELEMS:
        # Kernel launch + a single tiny grid step is pure overhead for inputs
        # like data=[1,2,3]; also keeps the 1-D path free of VMEM-OOM risk.
        return jax.nn.softmax(x, axis=0)

    orig_shape = x.shape
    out_dtype = x.dtype
    x2d = x.reshape(x.shape[0], -1)        # softmax axis stays axis 0
    rows, cols = x2d.shape

    vmem_limit, tile_budget = _vmem_config()
    elem_bytes = x2d.dtype.itemsize
    temp_bytes = 4 if x2d.dtype == jnp.float32 else 8   # f32 working copies

    tc = _plan_single_pass(rows, cols, elem_bytes, temp_bytes, tile_budget)
    if tc is not None:
        out = _softmax_dim0_single_pass(x2d, out_dtype, tc, vmem_limit)
    else:
        tr, tc = _plan_two_pass(rows, cols, elem_bytes, temp_bytes, tile_budget)
        out = _softmax_dim0_two_pass(x2d, out_dtype, tr, tc, vmem_limit)
    return out.reshape(orig_shape)


class SoftmaxStable:
    """Thin wrapper mirroring the PyTorch SoftmaxStable module."""

    def __call__(self, x):
        return my_softmax(x)


if __name__ == "__main__":
    key = jax.random.PRNGKey(0)
    k1, k2, k3, k4, k5 = jax.random.split(key, 5)

    # Mirror the module's literal usage: data = [1, 2, 3], softmax(dim=0).
    data = jnp.array([1.0, 2.0, 3.0], dtype=jnp.float32)
    out = SoftmaxStable()(data)
    jax.block_until_ready(out)
    assert jnp.allclose(out, jax.nn.softmax(data, axis=0), atol=1e-6, rtol=1e-6), \
        "1-D softmax mismatch"

    # Small 2-D input: fast path, just semantics check.
    xs = jax.random.normal(k1, (5, 300), dtype=jnp.float32)
    ys = my_softmax(xs)
    jax.block_until_ready(ys)
    assert jnp.allclose(ys, jax.nn.softmax(xs, axis=0), atol=1e-6, rtol=1e-6), \
        "small 2-D softmax mismatch"

    # 2-D input large enough for the single-pass kernel (grid split for v7x).
    x = jax.random.normal(k2, (8, 2048), dtype=jnp.float32)
    y = my_softmax(x)
    jax.block_until_ready(y)
    assert jnp.allclose(y, jax.nn.softmax(x, axis=0), atol=1e-6, rtol=1e-6), \
        "2-D single-pass softmax mismatch"

    # Ragged width: exercises the masked boundary column block (no pad/slice).
    xr = jax.random.normal(k3, (8, 2100), dtype=jnp.float32)
    yr = my_softmax(xr)
    jax.block_until_ready(yr)
    assert jnp.allclose(yr, jax.nn.softmax(xr, axis=0), atol=1e-6, rtol=1e-6), \
        "ragged 2-D softmax mismatch"

    # 3-D input: trailing dims collapse into lanes, softmax still over dim 0.
    x3 = jax.random.normal(k4, (8, 32, 64), dtype=jnp.float32)
    y3 = my_softmax(x3)
    jax.block_until_ready(y3)
    assert jnp.allclose(y3, jax.nn.softmax(x3, axis=0), atol=1e-6, rtol=1e-6), \
        "3-D softmax mismatch"

    # bf16 input: exercises the upcast / downcast kernel branch.
    xb = jax.random.normal(k5, (8, 2048), dtype=jnp.bfloat16)
    yb = my_softmax(xb)
    jax.block_until_ready(yb)
    ref_b = jax.nn.softmax(xb.astype(jnp.float32), axis=0)
    assert jnp.allclose(yb.astype(jnp.float32), ref_b, atol=1e-2, rtol=1e-2), \
        "bf16 softmax mismatch"

    # Two-pass (blocked-R) path, forced with small tiles to validate it on TPU:
    # TR=16 (does not divide R=60 -> row masking), TC=256 with a ragged C=640.
    x_tall = jax.random.normal(k1, (60, 640), dtype=jnp.float32)
    y_tall = _softmax_dim0_two_pass(x_tall, jnp.float32, 16, 256, 48 << 20)
    jax.block_until_ready(y_tall)
    assert jnp.allclose(y_tall, jax.nn.softmax(x_tall, axis=0),
                        atol=1e-6, rtol=1e-6), "two-pass softmax mismatch"

    print("KERNEL_OK")
</pallas_src>

<mosaic_0001>
module attributes {stable_mosaic.version = 11 : i64} {
  func.func @_softmax_dim0_kernel(%arg0: i32, %arg1: memref<8x1024xf32, #tpu.memory_space<vmem>>, %arg2: memref<8x1024xf32, #tpu.memory_space<vmem>>) attributes {dimension_semantics = [#tpu.dimension_semantics<parallel>], iteration_bounds = array<i64: 2>, scalar_prefetch = 0 : i64, scratch_operands = 0 : i64, tpu.core_type = #tpu.core_type<tc>, window_params = [{transform_indices = @transform_0, window_bounds = array<i64: 8, 1024>}, {transform_indices = @transform_1, window_bounds = array<i64: 8, 1024>}]} {
    %c0 = arith.constant 0 : index
    %c0_0 = arith.constant 0 : index
    %0 = vector.load %arg1[%c0, %c0_0] : memref<8x1024xf32, #tpu.memory_space<vmem>>, vector<8x1024xf32>
    %cst = arith.constant dense<0xFF800000> : vector<1024xf32>
    %1 = vector.multi_reduction <maximumf>, %0, %cst [0] : vector<8x1024xf32> to vector<1024xf32>
    %2 = vector.shape_cast %1 : vector<1024xf32> to vector<1x1024xf32>
    %3 = vector.broadcast %2 : vector<1x1024xf32> to vector<8x1024xf32>
    %4 = arith.subf %0, %3 : vector<8x1024xf32>
    %5 = math.exp %4 : vector<8x1024xf32>
    %c0_1 = arith.constant 0 : index
    %c0_2 = arith.constant 0 : index
    %6 = vector.load %arg2[%c0_1, %c0_2] : memref<8x1024xf32, #tpu.memory_space<vmem>>, vector<8x1024xf32>
    tpu.vector_store %arg2[%c0_1, %c0_2], %5 {strides = array<i32>} : memref<8x1024xf32, #tpu.memory_space<vmem>>, vector<8x1024xf32>,
    %c0_3 = arith.constant 0 : index
    %c0_4 = arith.constant 0 : index
    %7 = vector.load %arg2[%c0_3, %c0_4] : memref<8x1024xf32, #tpu.memory_space<vmem>>, vector<8x1024xf32>
    %cst_5 = arith.constant dense<0.000000e+00> : vector<1024xf32>
    %8 = vector.multi_reduction <add>, %7, %cst_5 [0] : vector<8x1024xf32> to vector<1024xf32>
    %9 = vector.shape_cast %8 : vector<1024xf32> to vector<1x1024xf32>
    %c0_6 = arith.constant 0 : index
    %c0_7 = arith.constant 0 : index
    %10 = vector.load %arg2[%c0_6, %c0_7] : memref<8x1024xf32, #tpu.memory_space<vmem>>, vector<8x1024xf32>
    %11 = tpu.reciprocal %9 : vector<1x1024xf32> -> vector<1x1024xf32>
    %12 = vector.broadcast %11 : vector<1x1024xf32> to vector<8x1024xf32>
    %13 = arith.mulf %10, %12 : vector<8x1024xf32>
    %c0_8 = arith.constant 0 : index
    %c0_9 = arith.constant 0 : index
    %14 = vector.load %arg2[%c0_8, %c0_9] : memref<8x1024xf32, #tpu.memory_space<vmem>>, vector<8x1024xf32>
    tpu.vector_store %arg2[%c0_8, %c0_9], %13 {strides = array<i32>} : memref<8x1024xf32, #tpu.memory_space<vmem>>, vector<8x1024xf32>,
    return
  }
  func.func @transform_0(%arg0: i32) -> (i32, i32) {
    %c0_i32 = arith.constant 0 : i32
    %c0_i32_0 = arith.constant 0 : i32
    return %c0_i32, %arg0 : i32, i32
  }
  func.func @transform_1(%arg0: i32) -> (i32, i32) {
    %c0_i32 = arith.constant 0 : i32
    %c0_i32_0 = arith.constant 0 : i32
    return %c0_i32, %arg0 : i32, i32
  }
}

</mosaic_0001>

<llo_original>
// kernel: tpu_custom_call.1
$region0: #{tpu_custom_call.1}
  #allocation0 [shape = 'u32[]', space=smem, size = 0x4, offset = 0x4, fixed_abs, tag = 'smem constant byte address 0x4 - core index']
  #allocation1 [shape = 'u32[144,128]{1,0:T(1,128)}', space=vmem, size = 0x12000, scoped, tag = 'internal scratch']
  %s0 = inlined_call_operand.hbm [shape: f32[8,2048], index: 0, kind: input, shape index: {}]
  %s1 = inlined_call_operand.hbm [shape: f32[8,2048], index: 1, kind: output, shape index: {}]
  %s2 = sld [smem:[#allocation0]]
  $region41: #{tpu_custom_call.1} parent=0
    _
  %s4 = ssub.s32 1, %s2
  %s5 = scalar_select 0, %s4, %s2
  $region1: #{tpu_custom_call.1} parent=0
    #allocation2 [shape = 'u8[65536]{0}', space=vmem, size = 0x10000, scoped, tag = 'input window, operand 0']
    #allocation3 [shape = 's32[2]{0}', space=sflag, size = 0x8, scoped, tag = 'scoped memory for tpu_custom_call.1']
    #allocation4 [shape = 's32[2]{0}', space=sflag, size = 0x8, scoped, tag = 'scoped memory for tpu_custom_call.1']
    #allocation5 [shape = 'u8[65536]{0}', space=vmem, size = 0x10000, scoped, tag = 'output window, operand 0']
    %6 = vsyncpa [#allocation3], 0
    %s7 = scalar_lea.sflag [#allocation3], 1
    %8 = vsyncpa %s7, 0
    %9 = vsyncpa [#allocation4], 0
    %s10 = scalar_lea.sflag [#allocation4], 1
    %11 = vsyncpa %s10, 0
    loop: start=0, step=1, limit=4
    $region2: #{tpu_custom_call.1} parent=1 // loop_pre_header
      _
    $region3: #{tpu_custom_call.1} parent=1 // loop_header
      %s13 = sphi 0, %s17
      %p14 = scmp.ge.s32.totalorder %s13, 4
      %s23 = sphi 0, %s25
      %s26 = sphi 0, %s23
      %s27 = sphi 0, %s26
      %s43 = sphi 0, %s27
      %s49 = sphi 0, %s51
      %s52 = sphi 0, %s49
      %s53 = sphi 0, %s52
      %s69 = sphi 0, %s53
    $region4: #{tpu_custom_call.1} parent=1 // loop_header_branch
      %16 = sbr.rel (%p14) target = $region8
    $region5: #{tpu_custom_call.1} parent=1 // loop_body
      %s18 = ssub.s32 %s13, 1
      %s19 = ssub.s32 %s13, 2
      %s20 = sadd.s32 %s13, 1
      %s21 = ssub.s32 %s13, %s20
      %p22 = scmp.eq.s32.totalorder %s21, 0
      %s24 = sadd.s32 %s23, 1
      %s25 = scalar_select %p22, %s23, %s24
      %p28 = pneg %p22
      %p29 = scmp.eq.s32.totalorder %s13, 1
      %p30 = por %p28, %p29
      %p31 = scmp.ne.s32.totalorder %s23, %s26
      %p32 = scmp.eq.s32.totalorder %s13, 0
      %p33 = por %p31, %p32
      %p34 = scmp.ne.s32.totalorder %s23, %s26
      %p35 = scmp.eq.s32.totalorder %s18, 1
      %p36 = por %p34, %p35
      %p37 = scmp.ne.s32.totalorder %s26, %s27
      %p38 = scmp.eq.s32.totalorder %s18, 0
      %p39 = por %p37, %p38
      %p40 = scmp.ne.s32.totalorder %s26, %s27
      %p41 = scmp.eq.s32.totalorder %s19, 1
      %p42 = por %p40, %p41
      %p44 = scmp.ne.s32.totalorder %s27, %s43
      %p45 = scmp.eq.s32.totalorder %s19, 0
      %p46 = por %p44, %p45
      %s47 = ssub.s32 %s13, %s20
      %p48 = scmp.eq.s32.totalorder %s47, 0
      %s50 = sadd.s32 %s49, 1
      %s51 = scalar_select %p48, %s49, %s50
      %p54 = pneg %p48
      %p55 = scmp.eq.s32.totalorder %s13, 1
      %p56 = por %p54, %p55
      %p57 = scmp.ne.s32.totalorder %s49, %s52
      %p58 = scmp.eq.s32.totalorder %s13, 0
      %p59 = por %p57, %p58
      %p60 = scmp.ne.s32.totalorder %s49, %s52
      %p61 = scmp.eq.s32.totalorder %s18, 1
      %p62 = por %p60, %p61
      %p63 = scmp.ne.s32.totalorder %s52, %s53
      %p64 = scmp.eq.s32.totalorder %s18, 0
      %p65 = por %p63, %p64
      %p66 = scmp.ne.s32.totalorder %s52, %s53
      %p67 = scmp.eq.s32.totalorder %s19, 1
      %p68 = por %p66, %p67
      %p70 = scmp.ne.s32.totalorder %s53, %s69
      %p71 = scmp.eq.s32.totalorder %s19, 0
      %p72 = por %p70, %p71
      %p73 = scmp.le.s32.totalorder 1, %s13
      %p74 = scmp.lt.s32.totalorder %s13, 3
      %p75 = pnand %p73, %p74
      %p76 = pneg %p75
      // Predicated region
      $region9: #{tpu_custom_call.1} parent=5 // pred_check
        _
      $region10: #{tpu_custom_call.1} parent=5 // pred_check_branch
        %78 = sbr.rel (%p75) target = $region12
      $region11: #{tpu_custom_call.1} parent=5 // pred_region
        %s79 = ssub.s32 %s13, 1
      $region12: #{tpu_custom_call.1} parent=5 // pred_fallthru
        _
      %p80 = scmp.lt.s32.totalorder %s13, 2
      // Predicated region
      $region13: #{tpu_custom_call.1} parent=5 // pred_check
        %p81 = pneg %p80
      $region14: #{tpu_custom_call.1} parent=5 // pred_check_branch
        %83 = sbr.rel (%p81) target = $region16
      $region15: #{tpu_custom_call.1} parent=5 // pred_region
        // Predicated region
        $region17: #{tpu_custom_call.1} parent=15 // pred_check
          %p84 = pneg %p33
        $region18: #{tpu_custom_call.1} parent=15 // pred_check_branch
          %86 = sbr.rel (%p84) target = $region20
        $region19: #{tpu_custom_call.1} parent=15 // pred_region
          %s87 = sand.u32 %s23, 1
          %s88 = scalar_lea.sflag [#allocation3], %s87
          %s89 = sand.u32 %s23, 1
          %s90 = smul.addr %s89, 64
          %s91 = scalar_lea.vmem [#allocation2], %s90
          %s92 = smul.u32 8, %s13
          %s94 = ssub.s32 1024, 1024
          %95 = vsyncadd %s88, %s94
          %s96 = smul.addr %s92, 128
          %s97 = scalar_lea.hbm %s0, %s96
          %s99 = sshll.u32 %s91, 4
          %s100 = int_to_ptr.vmem [resolvable:$true] %s99
          %102 = dma.hbm_to_vmem [thread:$0]  %s97, 1024, %s100, %s88
        $region20: #{tpu_custom_call.1} parent=15 // pred_fallthru
          _
      $region16: #{tpu_custom_call.1} parent=5 // pred_fallthru
        _
      %p103 = scmp.le.s32.totalorder 1, %s13
      %p104 = scmp.lt.s32.totalorder %s13, 3
      %p105 = pnand %p103, %p104
      %p106 = pneg %p105
      // Predicated region
      $region21: #{tpu_custom_call.1} parent=5 // pred_check
        _
      $region22: #{tpu_custom_call.1} parent=5 // pred_check_branch
        %108 = sbr.rel (%p105) target = $region24
      $region23: #{tpu_custom_call.1} parent=5 // pred_region
        %s109 = ssub.s32 %s13, 1
        %s110 = sand.u32 %s26, 1
        %s111 = scalar_lea.sflag [#allocation3], %s110
        %s112 = sand.u32 %s26, 1
        %s113 = smul.addr %s112, 64
        %s114 = scalar_lea.vmem [#allocation2], %s113
        // Predicated region
        $region25: #{tpu_custom_call.1} parent=23 // pred_check
          %p115 = pneg %p39
        $region26: #{tpu_custom_call.1} parent=23 // pred_check_branch
          %117 = sbr.rel (%p115) target = $region28
        $region27: #{tpu_custom_call.1} parent=23 // pred_region
          %118 = dma.done %s111, 1024
        $region28: #{tpu_custom_call.1} parent=23 // pred_fallthru
          _
        %s119 = sand.u32 %s26, 1
        %s120 = scalar_lea.sflag [#allocation3], %s119
        %s121 = sand.u32 %s26, 1
        %s122 = smul.addr %s121, 64
        %s123 = scalar_lea.vmem [#allocation2], %s122
        %p124 = pneg %p39
        %p125 = pneg %p36
        %p126 = pneg %p65
        %p127 = pneg %p62
        %s128 = sand.u32 %s52, 1
        %s129 = scalar_lea.sflag [#allocation4], %s128
        %s130 = sand.u32 %s52, 1
        %s131 = smul.addr %s130, 64
        %s132 = scalar_lea.vmem [#allocation5], %s131
        %s133 = smul.u32 8, %s18
        %s134 = smul.u32 8, %s18
        %v135 = vld [vmem:[%s114] sm:$0xff]
        %v136 = vld [vmem:[%s114 + $0x8] sm:$0xff]
        %v137 = vld [vmem:[%s114 + $0x10] sm:$0xff]
        %v138 = vld [vmem:[%s114 + $0x18] sm:$0xff]
        %v139 = vld [vmem:[%s114 + $0x20] sm:$0xff]
        %v140 = vld [vmem:[%s114 + $0x28] sm:$0xff]
        %v141 = vld [vmem:[%s114 + $0x30] sm:$0xff]
        %v142 = vld [vmem:[%s114 + $0x38] sm:$0xff]
        %v143 = vrot.slane %v135, 4
        %v144 = vmax.f32 %v135, %v143
        %v145 = vrot.slane %v144, 2
        %v146 = vmax.f32 %v144, %v145
        %v147 = vrot.slane %v146, 1
        %v148 = vmax.f32 %v146, %v147
        %v149 = vrot.slane %v136, 4
        %v150 = vmax.f32 %v136, %v149
        %v151 = vrot.slane %v150, 2
        %v152 = vmax.f32 %v150, %v151
        %v153 = vrot.slane %v152, 1
        %v154 = vmax.f32 %v152, %v153
        %v155 = vrot.slane %v137, 4
        %v156 = vmax.f32 %v137, %v155
        %v157 = vrot.slane %v156, 2
        %v158 = vmax.f32 %v156, %v157
        %v159 = vrot.slane %v158, 1
        %v160 = vmax.f32 %v158, %v159
        %v161 = vrot.slane %v138, 4
        %v162 = vmax.f32 %v138, %v161
        %v163 = vrot.slane %v162, 2
        %v164 = vmax.f32 %v162, %v163
        %v165 = vrot.slane %v164, 1
        %v166 = vmax.f32 %v164, %v165
        %v167 = vrot.slane %v139, 4
        %v168 = vmax.f32 %v139, %v167
        %v169 = vrot.slane %v168, 2
        %v170 = vmax.f32 %v168, %v169
        %v171 = vrot.slane %v170, 1
        %v172 = vmax.f32 %v170, %v171
        %v173 = vrot.slane %v140, 4
        %v174 = vmax.f32 %v140, %v173
        %v175 = vrot.slane %v174, 2
        %v176 = vmax.f32 %v174, %v175
        %v177 = vrot.slane %v176, 1
        %v178 = vmax.f32 %v176, %v177
        %v179 = vrot.slane %v141, 4
        %v180 = vmax.f32 %v141, %v179
        %v181 = vrot.slane %v180, 2
        %v182 = vmax.f32 %v180, %v181
        %v183 = vrot.slane %v182, 1
        %v184 = vmax.f32 %v182, %v183
        %v185 = vrot.slane %v142, 4
        %v186 = vmax.f32 %v142, %v185
        %v187 = vrot.slane %v186, 2
        %v188 = vmax.f32 %v186, %v187
        %v189 = vrot.slane %v188, 1
        %v190 = vmax.f32 %v188, %v189
        %v191 = vsub.f32 %v135, %v148
        %v192 = vsub.f32 %v136, %v154
        %v193 = vsub.f32 %v137, %v160
        %v194 = vsub.f32 %v138, %v166
        %v195 = vsub.f32 %v139, %v172
        %v196 = vsub.f32 %v140, %v178
        %v197 = vsub.f32 %v141, %v184
        %v198 = vsub.f32 %v142, %v190
        %v199 = vmul.f32 %v191, 1.442695
        %v200 = vpow.pop %v199
        %v201 = vmul.f32 %v192, 1.442695
        %v202 = vpow.pop %v201
        %v203 = vmul.f32 %v193, 1.442695
        %v204 = vpow.pop %v203
        %v205 = vmul.f32 %v194, 1.442695
        %v206 = vpow.pop %v205
        %v207 = vmul.f32 %v195, 1.442695
        %v208 = vpow.pop %v207
        %v209 = vmul.f32 %v196, 1.442695
        %v210 = vpow.pop %v209
        %v211 = vmul.f32 %v197, 1.442695
        %v212 = vpow.pop %v211
        %v213 = vmul.f32 %v198, 1.442695
        %v214 = vpow.pop %v213
        %215 = vst [vmem:[%s132] sm:$0xff] %v200
        %216 = vst [vmem:[%s132 + $0x8] sm:$0xff] %v202
        %217 = vst [vmem:[%s132 + $0x10] sm:$0xff] %v204
        %218 = vst [vmem:[%s132 + $0x18] sm:$0xff] %v206
        %219 = vst [vmem:[%s132 + $0x20] sm:$0xff] %v208
        %220 = vst [vmem:[%s132 + $0x28] sm:$0xff] %v210
        %221 = vst [vmem:[%s132 + $0x30] sm:$0xff] %v212
        %222 = vst [vmem:[%s132 + $0x38] sm:$0xff] %v214
        %v223 = vld [vmem:[%s132] sm:$0xff]
        %v224 = vld [vmem:[%s132 + $0x8] sm:$0xff]
        %v225 = vld [vmem:[%s132 + $0x10] sm:$0xff]
        %v226 = vld [vmem:[%s132 + $0x18] sm:$0xff]
        %v227 = vld [vmem:[%s132 + $0x20] sm:$0xff]
        %v228 = vld [vmem:[%s132 + $0x28] sm:$0xff]
        %v229 = vld [vmem:[%s132 + $0x30] sm:$0xff]
        %v230 = vld [vmem:[%s132 + $0x38] sm:$0xff]
        %v231 = vrot.slane %v223, 4
        %v232 = vadd.f32 %v223, %v231
        %v233 = vrot.slane %v232, 2
        %v234 = vadd.f32 %v232, %v233
        %v235 = vrot.slane %v234, 1
        %v236 = vadd.f32 %v234, %v235
        %v237 = vrot.slane %v224, 4
        %v238 = vadd.f32 %v224, %v237
        %v239 = vrot.slane %v238, 2
        %v240 = vadd.f32 %v238, %v239
        %v241 = vrot.slane %v240, 1
        %v242 = vadd.f32 %v240, %v241
        %v243 = vrot.slane %v225, 4
        %v244 = vadd.f32 %v225, %v243
        %v245 = vrot.slane %v244, 2
        %v246 = vadd.f32 %v244, %v245
        %v247 = vrot.slane %v246, 1
        %v248 = vadd.f32 %v246, %v247
        %v249 = vrot.slane %v226, 4
        %v250 = vadd.f32 %v226, %v249
        %v251 = vrot.slane %v250, 2
        %v252 = vadd.f32 %v250, %v251
        %v253 = vrot.slane %v252, 1
        %v254 = vadd.f32 %v252, %v253
        %v255 = vrot.slane %v227, 4
        %v256 = vadd.f32 %v227, %v255
        %v257 = vrot.slane %v256, 2
        %v258 = vadd.f32 %v256, %v257
        %v259 = vrot.slane %v258, 1
        %v260 = vadd.f32 %v258, %v259
        %v261 = vrot.slane %v228, 4
        %v262 = vadd.f32 %v228, %v261
        %v263 = vrot.slane %v262, 2
        %v264 = vadd.f32 %v262, %v263
        %v265 = vrot.slane %v264, 1
        %v266 = vadd.f32 %v264, %v265
        %v267 = vrot.slane %v229, 4
        %v268 = vadd.f32 %v229, %v267
        %v269 = vrot.slane %v268, 2
        %v270 = vadd.f32 %v268, %v269
        %v271 = vrot.slane %v270, 1
        %v272 = vadd.f32 %v270, %v271
        %v273 = vrot.slane %v230, 4
        %v274 = vadd.f32 %v230, %v273
        %v275 = vrot.slane %v274, 2
        %v276 = vadd.f32 %v274, %v275
        %v277 = vrot.slane %v276, 1
        %v278 = vadd.f32 %v276, %v277
        %v279 = vrcp.pop %v236
        %v280 = vrcp.pop %v242
        %v281 = vrcp.pop %v248
        %v282 = vrcp.pop %v254
        %v283 = vrcp.pop %v260
        %v284 = vrcp.pop %v266
        %v285 = vrcp.pop %v272
        %v286 = vrcp.pop %v278
        %v287 = vmul.f32 %v223, %v279
        %v288 = vmul.f32 %v224, %v280
        %v289 = vmul.f32 %v225, %v281
        %v290 = vmul.f32 %v226, %v282
        %v291 = vmul.f32 %v227, %v283
        %v292 = vmul.f32 %v228, %v284
        %v293 = vmul.f32 %v229, %v285
        %v294 = vmul.f32 %v230, %v286
        %295 = vst [vmem:[%s132] sm:$0xff] %v287
        %296 = vst [vmem:[%s132 + $0x8] sm:$0xff] %v288
        %297 = vst [vmem:[%s132 + $0x10] sm:$0xff] %v289
        %298 = vst [vmem:[%s132 + $0x18] sm:$0xff] %v290
        %299 = vst [vmem:[%s132 + $0x20] sm:$0xff] %v291
        %300 = vst [vmem:[%s132 + $0x28] sm:$0xff] %v292
        %301 = vst [vmem:[%s132 + $0x30] sm:$0xff] %v293
        %302 = vst [vmem:[%s132 + $0x38] sm:$0xff] %v294
        %s303 = sand.u32 %s52, 1
        %s304 = scalar_lea.sflag [#allocation4], %s303
        %s305 = sand.u32 %s52, 1
        %s306 = smul.addr %s305, 64
        %s307 = scalar_lea.vmem [#allocation5], %s306
        // Predicated region
        $region29: #{tpu_custom_call.1} parent=23 // pred_check
          %p308 = pneg %p62
        $region30: #{tpu_custom_call.1} parent=23 // pred_check_branch
          %310 = sbr.rel (%p308) target = $region32
        $region31: #{tpu_custom_call.1} parent=23 // pred_region
          %s311 = smul.u32 8, %s18
          %s313 = ssub.s32 1024, 1024
          %314 = vsyncadd %s304, %s313
          %s315 = smul.addr %s311, 128
          %s316 = scalar_lea.hbm %s1, %s315
          %s318 = sshll.u32 %s307, 4
          %s319 = int_to_ptr.vmem [resolvable:$true] %s318
          %321 = dma.vmem_to_hbm [thread:$0]  %s319, 1024, %s316, %s304
        $region32: #{tpu_custom_call.1} parent=23 // pred_fallthru
          _
      $region24: #{tpu_custom_call.1} parent=5 // pred_fallthru
        _
      %p322 = scmp.le.s32.totalorder 2, %s13
      // Predicated region
      $region33: #{tpu_custom_call.1} parent=5 // pred_check
        %p323 = pneg %p322
      $region34: #{tpu_custom_call.1} parent=5 // pred_check_branch
        %325 = sbr.rel (%p323) target = $region36
      $region35: #{tpu_custom_call.1} parent=5 // pred_region
        %s326 = ssub.s32 %s13, 2
        // Predicated region
        $region37: #{tpu_custom_call.1} parent=35 // pred_check
          %p327 = pneg %p68
        $region38: #{tpu_custom_call.1} parent=35 // pred_check_branch
          %329 = sbr.rel (%p327) target = $region40
        $region39: #{tpu_custom_call.1} parent=35 // pred_region
          %s330 = sand.u32 %s53, 1
          %s331 = scalar_lea.sflag [#allocation4], %s330
          %s332 = sand.u32 %s53, 1
          %s333 = smul.addr %s332, 64
          %s334 = scalar_lea.vmem [#allocation5], %s333
          %335 = dma.done %s331, 1024
        $region40: #{tpu_custom_call.1} parent=35 // pred_fallthru
          _
      $region36: #{tpu_custom_call.1} parent=5 // pred_fallthru
        _
    $region6: #{tpu_custom_call.1} parent=1 // loop_footer
      %s17 = sadd.s32 1, %s13
    $region7: #{tpu_custom_call.1} parent=1 // loop_footer_branch
      %12 = sbr.rel target = $region3
    $region8: #{tpu_custom_call.1} parent=1 // loop_exit
      _
    %336 = vsyncpa [#allocation3], 1
    %s337 = scalar_lea.sflag [#allocation3], 1
    %338 = vsyncpa %s337, 1
    %339 = vsyncpa [#allocation4], 1
    %s340 = scalar_lea.sflag [#allocation4], 1
    %341 = vsyncpa %s340, 1

</llo_original>
